<compile_context>
chip_gen: v6e
topology: v6e:2x2x1
jax: 0.10.0
libtpu: 0.0.40
codegen_flags: <defaults>
</compile_context>

<pallas_src>
import jax
import jax.numpy as jnp
from jax.experimental import pallas as pl
from jax.experimental.pallas import tpu as pltpu


def _actor_kernel(ma_ref, obs_ref, w1_ref, b1_ref, w2_ref, b2_ref,
                  w3_ref, b3_ref, out_ref):
    """Whole MLP on one (feature, batch_tile) tile.

    obs_ref: (S, TB)   w1:(H,S) b1:(H,1)  w2:(H,H) b2:(H,1)  w3:(A,H) b3:(A,1)
    out_ref: (A, TB)   ma_ref: (1,1) SMEM scalar (max_action)
    """
    x = obs_ref[...]                                               # (S, TB)
    # Layer 1: Linear + ReLU
    h1 = jnp.dot(w1_ref[...], x, preferred_element_type=jnp.float32)   # (H, TB)
    h1 = jnp.maximum(h1 + b1_ref[...], 0.0)
    # Layer 2: Linear + Tanh
    h2 = jnp.dot(w2_ref[...], h1, preferred_element_type=jnp.float32)  # (H, TB)
    h2 = jnp.tanh(h2 + b2_ref[...])
    # Layer 3: Linear + Tanh, scaled by max_action (scalar multiply)
    h3 = jnp.dot(w3_ref[...], h2, preferred_element_type=jnp.float32)  # (A, TB)
    mu = ma_ref[0, 0] * jnp.tanh(h3 + b3_ref[...])
    out_ref[...] = mu.astype(out_ref.dtype)


def _round_up(x, m):
    return ((x + m - 1) // m) * m


def actor_forward(obs, params, max_action=1.0,
                  max_batch_tile=16384, small_batch_threshold=1024):
    """Runs the Actor MLP as a single Pallas TPU kernel.

    obs:    (B, state_dim) float32  (PyTorch layout; transposed internally)
    params: dict with w1 (H,S), b1 (H,1), w2 (H,H), b2 (H,1), w3 (A,H), b3 (A,1)
            (weights stored PyTorch-style as (out_features, in_features)).
    Returns (B, action_dim) float32.
    """
    w1, b1 = params["w1"], params["b1"]
    w2, b2 = params["w2"], params["b2"]
    w3, b3 = params["w3"], params["b3"]

    B, S = obs.shape
    H = w1.shape[0]
    A = w3.shape[0]

    # Layout plumbing (outside the kernel): batch onto the lane axis.
    obs_t = obs.T                                                  # (S, B)
    ma = jnp.full((1, 1), max_action, dtype=jnp.float32)

    smem_spec = pl.BlockSpec(memory_space=pltpu.MemorySpace.SMEM)
    vmem_spec = pl.BlockSpec(memory_space=pltpu.MemorySpace.VMEM)

    if B <= small_batch_threshold:
        # Small batch (env stepping): gridless call, whole-array VMEM blocks,
        # no grid bookkeeping and no double-buffering of the 7 tiny operands.
        out_t = pl.pallas_call(
            _actor_kernel,
            out_shape=jax.ShapeDtypeStruct((A, B), jnp.float32),
            in_specs=[smem_spec] + [vmem_spec] * 7,
            out_specs=vmem_spec,
        )(ma, obs_t, w1, b1, w2, b2, w3, b3)
        return out_t.T                                             # (B, A)

    # Large batch (replay-buffer evaluation): tile the batch (lane) axis.
    #  * tile is a multiple of 128 -> lane-dense loads/stores,
    #  * tile <= ceil(B/2) rounded up -> at least 2 grid steps (v7x megacore),
    #  * B is padded up to a tile multiple -> arbitrary batch sizes work.
    tile = min(max_batch_tile, _round_up(pl.cdiv(B, 2), 128))
    Bp = _round_up(B, tile)
    if Bp != B:
        obs_t = jnp.pad(obs_t, ((0, 0), (0, Bp - B)))

    const2d = lambda i: (0, 0)   # weights/biases stay VMEM-resident
    out_t = pl.pallas_call(
        _actor_kernel,
        out_shape=jax.ShapeDtypeStruct((A, Bp), jnp.float32),
        grid=(Bp // tile,),
        in_specs=[
            smem_spec,                                         # max_action
            pl.BlockSpec((S, tile), lambda i: (0, i)),         # obs (S, B)
            pl.BlockSpec((H, S), const2d), pl.BlockSpec((H, 1), const2d),
            pl.BlockSpec((H, H), const2d), pl.BlockSpec((H, 1), const2d),
            pl.BlockSpec((A, H), const2d), pl.BlockSpec((A, 1), const2d),
        ],
        out_specs=pl.BlockSpec((A, tile), lambda i: (0, i)),
        compiler_params=pltpu.CompilerParams(
            dimension_semantics=("parallel",)),
    )(ma, obs_t, w1, b1, w2, b2, w3, b3)
    return out_t[:, :B].T                                          # (B, A)


def init_actor_params(key, state_dim, action_dim, hidden_dim):
    """PyTorch nn.Linear default init (U(-k, k), k=1/sqrt(fan_in)).
    Weights stored PyTorch-style as (out_features, in_features),
    biases as (out_features, 1)."""
    keys = jax.random.split(key, 6)

    def linear(kw, kb, fan_in, fan_out):
        bound = 1.0 / jnp.sqrt(fan_in)
        w = jax.random.uniform(kw, (fan_out, fan_in), jnp.float32, -bound, bound)
        b = jax.random.uniform(kb, (fan_out, 1), jnp.float32, -bound, bound)
        return w, b

    w1, b1 = linear(keys[0], keys[1], state_dim, hidden_dim)
    w2, b2 = linear(keys[2], keys[3], hidden_dim, hidden_dim)
    w3, b3 = linear(keys[4], keys[5], hidden_dim, action_dim)
    return {"w1": w1, "b1": b1, "w2": w2, "b2": b2, "w3": w3, "b3": b3}


def actor_reference(obs, params, max_action=1.0):
    """Pure-JAX reference for correctness checking (batch-major layout)."""
    h1 = jnp.maximum(obs @ params["w1"].T + params["b1"].T, 0.0)
    h2 = jnp.tanh(h1 @ params["w2"].T + params["b2"].T)
    return max_action * jnp.tanh(h2 @ params["w3"].T + params["b3"].T)


if __name__ == "__main__":
    # Pendulum-v1: state_dim=3, action_dim=1, max_action=2.0
    state_dim, action_dim, hidden_dim = 3, 1, 32
    max_action = 2.0

    key = jax.random.PRNGKey(0)
    k_params, k_obs_s, k_obs_l = jax.random.split(key, 3)
    params = init_actor_params(k_params, state_dim, action_dim, hidden_dim)

    # Small-batch path (env stepping): gridless, whole-array VMEM specs.
    batch_small = 8
    obs_s = jax.random.normal(k_obs_s, (batch_small, state_dim), jnp.float32)
    mu_s = jax.block_until_ready(actor_forward(obs_s, params, max_action))
    ref_s = actor_reference(obs_s, params, max_action)
    assert mu_s.shape == (batch_small, action_dim)
    assert jnp.allclose(mu_s, ref_s, atol=1e-5, rtol=1e-5)

    # Large-batch path (replay-buffer evaluation): batch on the lane axis,
    # ragged B (not a tile multiple) to exercise the pad-and-slice logic.
    batch_large = 384
    obs_l = jax.random.normal(k_obs_l, (batch_large, state_dim), jnp.float32)
    mu_l = jax.block_until_ready(
        actor_forward(obs_l, params, max_action, small_batch_threshold=128))
    ref_l = actor_reference(obs_l, params, max_action)
    assert mu_l.shape == (batch_large, action_dim)
    assert jnp.allclose(mu_l, ref_l, atol=1e-5, rtol=1e-5)

    print("KERNEL_OK")
</pallas_src>

<mosaic_0001>
module attributes {stable_mosaic.version = 11 : i64} {
  func.func @_actor_kernel(%arg0: memref<1x1xf32, #tpu.memory_space<smem>>, %arg1: memref<3x8xf32, #tpu.memory_space<vmem>>, %arg2: memref<32x3xf32, #tpu.memory_space<vmem>>, %arg3: memref<32x1xf32, #tpu.memory_space<vmem>>, %arg4: memref<32x32xf32, #tpu.memory_space<vmem>>, %arg5: memref<32x1xf32, #tpu.memory_space<vmem>>, %arg6: memref<1x32xf32, #tpu.memory_space<vmem>>, %arg7: memref<1x1xf32, #tpu.memory_space<vmem>>, %arg8: memref<1x8xf32, #tpu.memory_space<vmem>>) attributes {dimension_semantics = [], scalar_prefetch = 0 : i64, scratch_operands = 0 : i64, tpu.core_type = #tpu.core_type<tc>} {
    %c0 = arith.constant 0 : index
    %c0_0 = arith.constant 0 : index
    %0 = vector.load %arg1[%c0, %c0_0] : memref<3x8xf32, #tpu.memory_space<vmem>>, vector<3x8xf32>
    %c0_1 = arith.constant 0 : index
    %c0_2 = arith.constant 0 : index
    %1 = vector.load %arg2[%c0_1, %c0_2] : memref<32x3xf32, #tpu.memory_space<vmem>>, vector<32x3xf32>
    %cst = arith.constant dense<0.000000e+00> : vector<32x8xf32>
    %2 = tpu.matmul %1, %0, %cst {dimension_numbers = #tpu.dot_dimension_numbers<[1], [0], [0], [1], [0, 0, 1, 1], [], []>} : vector<32x3xf32>, vector<3x8xf32>, vector<32x8xf32> -> vector<32x8xf32>
    %c0_3 = arith.constant 0 : index
    %c0_4 = arith.constant 0 : index
    %3 = vector.load %arg3[%c0_3, %c0_4] : memref<32x1xf32, #tpu.memory_space<vmem>>, vector<32x1xf32>
    %4 = vector.broadcast %3 : vector<32x1xf32> to vector<32x8xf32>
    %5 = arith.addf %2, %4 : vector<32x8xf32>
    %cst_5 = arith.constant 0.000000e+00 : f32
    %6 = vector.broadcast %cst_5 : f32 to vector<32x8xf32>
    %7 = arith.maximumf %5, %6 : vector<32x8xf32>
    %c0_6 = arith.constant 0 : index
    %c0_7 = arith.constant 0 : index
    %8 = vector.load %arg4[%c0_6, %c0_7] : memref<32x32xf32, #tpu.memory_space<vmem>>, vector<32x32xf32>
    %cst_8 = arith.constant dense<0.000000e+00> : vector<32x8xf32>
    %9 = tpu.matmul %8, %7, %cst_8 {dimension_numbers = #tpu.dot_dimension_numbers<[1], [0], [0], [1], [0, 0, 1, 1], [], []>} : vector<32x32xf32>, vector<32x8xf32>, vector<32x8xf32> -> vector<32x8xf32>
    %c0_9 = arith.constant 0 : index
    %c0_10 = arith.constant 0 : index
    %10 = vector.load %arg5[%c0_9, %c0_10] : memref<32x1xf32, #tpu.memory_space<vmem>>, vector<32x1xf32>
    %11 = vector.broadcast %10 : vector<32x1xf32> to vector<32x8xf32>
    %12 = arith.addf %9, %11 : vector<32x8xf32>
    %13 = math.tanh %12 : vector<32x8xf32>
    %c0_11 = arith.constant 0 : index
    %c0_12 = arith.constant 0 : index
    %14 = vector.load %arg6[%c0_11, %c0_12] : memref<1x32xf32, #tpu.memory_space<vmem>>, vector<1x32xf32>
    %cst_13 = arith.constant dense<0.000000e+00> : vector<1x8xf32>
    %15 = tpu.matmul %14, %13, %cst_13 {dimension_numbers = #tpu.dot_dimension_numbers<[1], [0], [0], [1], [0, 0, 1, 1], [], []>} : vector<1x32xf32>, vector<32x8xf32>, vector<1x8xf32> -> vector<1x8xf32>
    %c0_14 = arith.constant 0 : index
    %c0_15 = arith.constant 0 : index
    %16 = memref.load %arg0[%c0_14, %c0_15] : memref<1x1xf32, #tpu.memory_space<smem>>
    %c0_16 = arith.constant 0 : index
    %c0_17 = arith.constant 0 : index
    %17 = vector.load %arg7[%c0_16, %c0_17] : memref<1x1xf32, #tpu.memory_space<vmem>>, vector<1x1xf32>
    %18 = vector.broadcast %17 : vector<1x1xf32> to vector<1x8xf32>
    %19 = arith.addf %15, %18 : vector<1x8xf32>
    %20 = math.tanh %19 : vector<1x8xf32>
    %21 = vector.broadcast %16 : f32 to vector<1x8xf32>
    %22 = arith.mulf %21, %20 : vector<1x8xf32>
    %c0_18 = arith.constant 0 : index
    %c0_19 = arith.constant 0 : index
    %23 = vector.load %arg8[%c0_18, %c0_19] : memref<1x8xf32, #tpu.memory_space<vmem>>, vector<1x8xf32>
    tpu.vector_store %arg8[%c0_18, %c0_19], %22 {strides = array<i32>} : memref<1x8xf32, #tpu.memory_space<vmem>>, vector<1x8xf32>,
    return
  }
}

</mosaic_0001>

<llo_original>
// kernel: tpu_custom_call.1
$region0: #{tpu_custom_call.1}
  #allocation0 [shape = 'u32[]', space=smem, size = 0x4, offset = 0x4, fixed_abs, tag = 'smem constant byte address 0x4 - core index']
  #allocation1 [shape = 'u32[144,128]{1,0:T(1,128)}', space=vmem, size = 0x12000, scoped, tag = 'internal scratch']
  #allocation2 [shape = 'f32[1,1]{1,0:T(1,128)S(6)}', space=smem, size = 0x200, scoped, tag = 'scoped memory for tpu_custom_call.1']
  #allocation3 [shape = 'f32[1,1]{1,0:T(1,128)S(1)}', space=vmem, size = 0x200, scoped, tag = 'scoped memory for tpu_custom_call.1']
  %s0 = inlined_call_operand.<no memory space> [shape: f32[1,1], index: 0, kind: input, shape index: {}]
  %s1 = inlined_call_operand.vmem [shape: f32[3,8], index: 1, kind: input, shape index: {}]
  %s2 = inlined_call_operand.vmem [shape: f32[32,3], index: 2, kind: input, shape index: {}]
  %s3 = inlined_call_operand.vmem [shape: f32[32,1], index: 3, kind: input, shape index: {}]
  %s4 = inlined_call_operand.vmem [shape: f32[32,32], index: 4, kind: input, shape index: {}]
  %s5 = inlined_call_operand.vmem [shape: f32[32,1], index: 5, kind: input, shape index: {}]
  %s6 = inlined_call_operand.vmem [shape: f32[1,32], index: 6, kind: input, shape index: {}]
  %s7 = inlined_call_operand.<no memory space> [shape: f32[1,1], index: 7, kind: input, shape index: {}]
  %s8 = inlined_call_operand.hbm [shape: f32[1,8], index: 8, kind: output, shape index: {}]
  %s9 = sld [smem:[#allocation0]]
  $region42: #{tpu_custom_call.1} parent=0
    _
  %s11 = ssub.s32 1, %s9
  %s12 = scalar_select 0, %s11, %s9
  %13 = sst [smem:[#allocation2]] %s0
  %v14 = vstv %s7
  %15 = vst [vmem:[#allocation3] sm:$0x1] %v14
  $region1: #{tpu_custom_call.1} parent=0
    #allocation4 [shape = 'u8[512]{0}', space=vmem, size = 0x400, scoped, tag = 'output window, operand 0, single buffered']
    #allocation5 [shape = 's32[1]{0}', space=sflag, size = 0x4, scoped, tag = 'scoped memory for tpu_custom_call.1']
    %16 = vsyncpa [#allocation5], 0
    // Predicated region
    $region2: #{tpu_custom_call.1} parent=1 // pred_check
      _
    $region3: #{tpu_custom_call.1} parent=1 // pred_check_branch
      %18 = sbr.rel (0) target = $region5
    $region4: #{tpu_custom_call.1} parent=1 // pred_region
      _
    $region5: #{tpu_custom_call.1} parent=1 // pred_fallthru
      _
    // Predicated region
    $region6: #{tpu_custom_call.1} parent=1 // pred_check
      _
    $region7: #{tpu_custom_call.1} parent=1 // pred_check_branch
      %20 = sbr.rel (0) target = $region9
    $region8: #{tpu_custom_call.1} parent=1 // pred_region
      _
    $region9: #{tpu_custom_call.1} parent=1 // pred_fallthru
      _
    // Predicated region
    $region10: #{tpu_custom_call.1} parent=1 // pred_check
      _
    $region11: #{tpu_custom_call.1} parent=1 // pred_check_branch
      %22 = sbr.rel (0) target = $region13
    $region12: #{tpu_custom_call.1} parent=1 // pred_region
      _
    $region13: #{tpu_custom_call.1} parent=1 // pred_fallthru
      _
    // Predicated region
    $region14: #{tpu_custom_call.1} parent=1 // pred_check
      _
    $region15: #{tpu_custom_call.1} parent=1 // pred_check_branch
      %24 = sbr.rel (0) target = $region17
    $region16: #{tpu_custom_call.1} parent=1 // pred_region
      _
    $region17: #{tpu_custom_call.1} parent=1 // pred_fallthru
      _
    // Predicated region
    $region18: #{tpu_custom_call.1} parent=1 // pred_check
      _
    $region19: #{tpu_custom_call.1} parent=1 // pred_check_branch
      %26 = sbr.rel (0) target = $region21
    $region20: #{tpu_custom_call.1} parent=1 // pred_region
      _
    $region21: #{tpu_custom_call.1} parent=1 // pred_fallthru
      _
    // Predicated region
    $region22: #{tpu_custom_call.1} parent=1 // pred_check
      _
    $region23: #{tpu_custom_call.1} parent=1 // pred_check_branch
      %28 = sbr.rel (0) target = $region25
    $region24: #{tpu_custom_call.1} parent=1 // pred_region
      _
    $region25: #{tpu_custom_call.1} parent=1 // pred_fallthru
      _
    // Predicated region
    $region26: #{tpu_custom_call.1} parent=1 // pred_check
      _
    $region27: #{tpu_custom_call.1} parent=1 // pred_check_branch
      %30 = sbr.rel (0) target = $region29
    $region28: #{tpu_custom_call.1} parent=1 // pred_region
      _
    $region29: #{tpu_custom_call.1} parent=1 // pred_fallthru
      _
    // Predicated region
    $region30: #{tpu_custom_call.1} parent=1 // pred_check
      _
    $region31: #{tpu_custom_call.1} parent=1 // pred_check_branch
      %32 = sbr.rel (0) target = $region33
    $region32: #{tpu_custom_call.1} parent=1 // pred_region
      _
    $region33: #{tpu_custom_call.1} parent=1 // pred_fallthru
      _
    %v33 = vld [vmem:[%s1] sm:$0x7]
    %v34 = vld [vmem:[%s2] sm:$0xff]
    %v35 = vld [vmem:[%s2 + $0x8] sm:$0xff]
    %v36 = vld [vmem:[%s2 + $0x10] sm:$0xff]
    %v37 = vld [vmem:[%s2 + $0x18] sm:$0xff]
    %v38 = vld [vmem:[%s3] sm:$0xff]
    %v39 = vld [vmem:[%s3 + $0x8] sm:$0xff]
    %v40 = vld [vmem:[%s3 + $0x10] sm:$0xff]
    %v41 = vld [vmem:[%s3 + $0x18] sm:$0xff]
    %43 = vset.pattern.permute.xlu0 0
    %44 = vperm.xlu0 %43, %v38
    %v45 = vpop.permute.xlu0 %44
    %48 = vset.pattern.permute.xlu0 0
    %49 = vperm.xlu0 %48, %v39
    %v50 = vpop.permute.xlu0 %49
    %53 = vset.pattern.permute.xlu0 0
    %54 = vperm.xlu0 %53, %v40
    %v55 = vpop.permute.xlu0 %54
    %58 = vset.pattern.permute.xlu0 0
    %59 = vperm.xlu0 %58, %v41
    %v60 = vpop.permute.xlu0 %59
    %vm62 = vcmask 23552
    %v64 = vsel %vm62, %v34, 0
    %v67 = vsel %vm62, %v35, 0
    %v70 = vsel %vm62, %v36, 0
    %v73 = vsel %vm62, %v37, 0
    %vm75 = vcmask 1042432
    %v77 = vsel %vm75, %v33, 0
    %79 = vmatprep.subr.mxu0 0.0
    %80 = vmatpush1.msra.mxu0 0.0
    %81 = vmatprep.subr.mxu0 0.0
    %82 = vmatpush1.msra.mxu0 0.0
    %83 = vmatprep.subr.mxu0 0.0
    %84 = vmatpush1.msra.mxu0 0.0
    %85 = vmatprep.subr.mxu0 0.0
    %86 = vmatpush1.msra.mxu0 0.0
    %87 = vmatprep.subr.mxu0 0.0
    %88 = vmatpush1.msra.mxu0 0.0
    %89 = vmatprep.subr.mxu0 0.0
    %90 = vmatpush1.msra.mxu0 0.0
    %91 = vmatprep.subr.mxu0 0.0
    %92 = vmatpush1.msra.mxu0 0.0
    %93 = vmatprep.subr.mxu0 0.0
    %94 = vmatpush1.msra.mxu0 0.0
    %95 = vmatprep.subr.mxu0 0.0
    %96 = vmatpush1.msra.mxu0 0.0
    %97 = vmatprep.subr.mxu0 0.0
    %98 = vmatpush1.msra.mxu0 0.0
    %99 = vmatprep.subr.mxu0 0.0
    %100 = vmatpush1.msra.mxu0 0.0
    %101 = vmatprep.subr.mxu0 0.0
    %102 = vmatpush1.msra.mxu0 0.0
    %103 = vmatprep.subr.mxu0 0.0
    %104 = vmatpush1.msra.mxu0 0.0
    %105 = vmatprep.subr.mxu0 0.0
    %106 = vmatpush1.msra.mxu0 0.0
    %107 = vmatprep.subr.mxu0 0.0
    %108 = vmatpush1.msra.mxu0 0.0
    %109 = vmatprep.subr.mxu0 0.0
    %110 = vmatpush1.msra.mxu0 %v77
    %111 = vmatprep.subr.mxu0 0.0
    %112 = vmatpush2.msra.mxu0 0.0
    %113 = vmatprep.subr.mxu0 0.0
    %114 = vmatpush2.msra.mxu0 0.0
    %115 = vmatprep.subr.mxu0 0.0
    %116 = vmatpush2.msra.mxu0 0.0
    %117 = vmatprep.subr.mxu0 0.0
    %118 = vmatpush2.msra.mxu0 0.0
    %119 = vmatprep.subr.mxu0 0.0
    %120 = vmatpush2.msra.mxu0 0.0
    %121 = vmatprep.subr.mxu0 0.0
    %122 = vmatpush2.msra.mxu0 0.0
    %123 = vmatprep.subr.mxu0 0.0
    %124 = vmatpush2.msra.mxu0 0.0
    %125 = vmatprep.subr.mxu0 0.0
    %126 = vmatpush2.msra.mxu0 0.0
    %127 = vmatprep.subr.mxu0 0.0
    %128 = vmatpush2.msra.mxu0 0.0
    %129 = vmatprep.subr.mxu0 0.0
    %130 = vmatpush2.msra.mxu0 0.0
    %131 = vmatprep.subr.mxu0 0.0
    %132 = vmatpush2.msra.mxu0 0.0
    %133 = vmatprep.subr.mxu0 0.0
    %134 = vmatpush2.msra.mxu0 0.0
    %135 = vmatprep.subr.mxu0 0.0
    %136 = vmatpush2.msra.mxu0 0.0
    %137 = vmatprep.subr.mxu0 0.0
    %138 = vmatpush2.msra.mxu0 0.0
    %139 = vmatprep.subr.mxu0 0.0
    %140 = vmatpush2.msra.mxu0 0.0
    %141 = vmatprep.subr.mxu0 0.0
    %142 = vmatpush2.msra.mxu0 0.0
    %143 = vmatprep.mubr.f32.mxu0 0.0
    %144 = vmatmul.mubr.f32.gmra.mxu0 %v64
    %v145 = vpop.f32.mrf.mxu0
    %v146 = vadd.f32 %v45, %v145
    %v147 = vpop.f32.mrf.mxu0
    %148 = vmatprep.mubr.f32.mxu0 0.0
    %149 = vmatmul.mubr.f32.gmra.mxu0 %v67
    %v150 = vpop.f32.mrf.mxu0
    %v151 = vadd.f32 %v50, %v150
    %v152 = vpop.f32.mrf.mxu0
    %153 = vmatprep.mubr.f32.mxu0 0.0
    %154 = vmatmul.mubr.f32.gmra.mxu0 %v70
    %v155 = vpop.f32.mrf.mxu0
    %v156 = vadd.f32 %v55, %v155
    %v157 = vpop.f32.mrf.mxu0
    %158 = vmatprep.mubr.f32.mxu0 0.0
    %159 = vmatmul.mubr.f32.gmra.mxu0 %v73
    %v160 = vpop.f32.mrf.mxu0
    %v161 = vadd.f32 %v60, %v160
    %v162 = vpop.f32.mrf.mxu0
    %163 = vdwg.mxu0
    %v164 = vmax.f32 %v146, 0.0
    %v165 = vmax.f32 %v151, 0.0
    %v166 = vmax.f32 %v156, 0.0
    %v167 = vmax.f32 %v161, 0.0
    %v168 = vld [vmem:[%s4] sm:$0xff]
    %v169 = vld [vmem:[%s4 + $0x8] sm:$0xff]
    %v170 = vld [vmem:[%s4 + $0x10] sm:$0xff]
    %v171 = vld [vmem:[%s4 + $0x18] sm:$0xff]
    %v172 = vld [vmem:[%s5] sm:$0xff]
    %v173 = vld [vmem:[%s5 + $0x8] sm:$0xff]
    %v174 = vld [vmem:[%s5 + $0x10] sm:$0xff]
    %v175 = vld [vmem:[%s5 + $0x18] sm:$0xff]
    %177 = vset.pattern.permute.xlu0 0
    %178 = vperm.xlu0 %177, %v172
    %v179 = vpop.permute.xlu0 %178
    %182 = vset.pattern.permute.xlu0 0
    %183 = vperm.xlu0 %182, %v173
    %v184 = vpop.permute.xlu0 %183
    %187 = vset.pattern.permute.xlu0 0
    %188 = vperm.xlu0 %187, %v174
    %v189 = vpop.permute.xlu0 %188
    %192 = vset.pattern.permute.xlu0 0
    %193 = vperm.xlu0 %192, %v175
    %v194 = vpop.permute.xlu0 %193
    %vm196 = vcmask 261120
    %v198 = vsel %vm196, %v168, 0
    %v201 = vsel %vm196, %v169, 0
    %v204 = vsel %vm196, %v170, 0
    %v207 = vsel %vm196, %v171, 0
    %209 = vmatprep.subr.mxu0 0.0
    %210 = vmatpush1.msra.mxu0 0.0
    %211 = vmatprep.subr.mxu0 0.0
    %212 = vmatpush1.msra.mxu0 0.0
    %213 = vmatprep.subr.mxu0 0.0
    %214 = vmatpush1.msra.mxu0 0.0
    %215 = vmatprep.subr.mxu0 0.0
    %216 = vmatpush1.msra.mxu0 0.0
    %217 = vmatprep.subr.mxu0 0.0
    %218 = vmatpush1.msra.mxu0 0.0
    %219 = vmatprep.subr.mxu0 0.0
    %220 = vmatpush1.msra.mxu0 0.0
    %221 = vmatprep.subr.mxu0 0.0
    %222 = vmatpush1.msra.mxu0 0.0
    %223 = vmatprep.subr.mxu0 0.0
    %224 = vmatpush1.msra.mxu0 0.0
    %225 = vmatprep.subr.mxu0 0.0
    %226 = vmatpush1.msra.mxu0 0.0
    %227 = vmatprep.subr.mxu0 0.0
    %228 = vmatpush1.msra.mxu0 0.0
    %229 = vmatprep.subr.mxu0 0.0
    %230 = vmatpush1.msra.mxu0 0.0
    %231 = vmatprep.subr.mxu0 0.0
    %232 = vmatpush1.msra.mxu0 0.0
    %233 = vmatprep.subr.mxu0 0.0
    %234 = vmatpush1.msra.mxu0 %v167
    %235 = vmatprep.subr.mxu0 0.0
    %236 = vmatpush1.msra.mxu0 %v166
    %237 = vmatprep.subr.mxu0 0.0
    %238 = vmatpush1.msra.mxu0 %v165
    %239 = vmatprep.subr.mxu0 0.0
    %240 = vmatpush1.msra.mxu0 %v164
    %241 = vmatprep.subr.mxu0 0.0
    %242 = vmatpush2.msra.mxu0 0.0
    %243 = vmatprep.subr.mxu0 0.0
    %244 = vmatpush2.msra.mxu0 0.0
    %245 = vmatprep.subr.mxu0 0.0
    %246 = vmatpush2.msra.mxu0 0.0
    %247 = vmatprep.subr.mxu0 0.0
    %248 = vmatpush2.msra.mxu0 0.0
    %249 = vmatprep.subr.mxu0 0.0
    %250 = vmatpush2.msra.mxu0 0.0
    %251 = vmatprep.subr.mxu0 0.0
    %252 = vmatpush2.msra.mxu0 0.0
    %253 = vmatprep.subr.mxu0 0.0
    %254 = vmatpush2.msra.mxu0 0.0
    %255 = vmatprep.subr.mxu0 0.0
    %256 = vmatpush2.msra.mxu0 0.0
    %257 = vmatprep.subr.mxu0 0.0
    %258 = vmatpush2.msra.mxu0 0.0
    %259 = vmatprep.subr.mxu0 0.0
    %260 = vmatpush2.msra.mxu0 0.0
    %261 = vmatprep.subr.mxu0 0.0
    %262 = vmatpush2.msra.mxu0 0.0
    %263 = vmatprep.subr.mxu0 0.0
    %264 = vmatpush2.msra.mxu0 0.0
    %265 = vmatprep.subr.mxu0 0.0
    %266 = vmatpush2.msra.mxu0 0.0
    %267 = vmatprep.subr.mxu0 0.0
    %268 = vmatpush2.msra.mxu0 0.0
    %269 = vmatprep.subr.mxu0 0.0
    %270 = vmatpush2.msra.mxu0 0.0
    %271 = vmatprep.subr.mxu0 0.0
    %272 = vmatpush2.msra.mxu0 0.0
    %273 = vmatprep.mubr.f32.mxu0 0.0
    %274 = vmatmul.mubr.f32.gmra.mxu0 %v198
    %v275 = vpop.f32.mrf.mxu0
    %v276 = vadd.f32 %v179, %v275
    %v277 = vpop.f32.mrf.mxu0
    %278 = vmatprep.mubr.f32.mxu0 0.0
    %279 = vmatmul.mubr.f32.gmra.mxu0 %v201
    %v280 = vpop.f32.mrf.mxu0
    %v281 = vadd.f32 %v184, %v280
    %v282 = vpop.f32.mrf.mxu0
    %283 = vmatprep.mubr.f32.mxu0 0.0
    %284 = vmatmul.mubr.f32.gmra.mxu0 %v204
    %v285 = vpop.f32.mrf.mxu0
    %v286 = vadd.f32 %v189, %v285
    %v287 = vpop.f32.mrf.mxu0
    %288 = vmatprep.mubr.f32.mxu0 0.0
    %289 = vmatmul.mubr.f32.gmra.mxu0 %v207
    %v290 = vpop.f32.mrf.mxu0
    %v291 = vadd.f32 %v194, %v290
    %v292 = vpop.f32.mrf.mxu0
    %293 = vdwg.mxu0
    %v294 = vtanh.pop %v276
    %v295 = vtanh.pop %v281
    %v296 = vtanh.pop %v286
    %v297 = vtanh.pop %v291
    %v298 = vld [vmem:[%s6] sm:$0x1]
    %s299 = sld [smem:[#allocation2]]
    %v300 = vld [vmem:[#allocation3] sm:$0x1]
    %302 = vset.pattern.permute.xlu0 0
    %303 = vperm.xlu0 %302, %v300
    %v304 = vpop.permute.xlu0 %303
    %v306 = vlaneseq
    %v307 = vshrl.u32 %v306, 7
    %v308 = vsub.s32 0, %v307
    %v309 = vrot.slane %v304, %v308
    %v311 = vsel %vm196, %v298, 0
    %313 = vmatprep.subr.mxu0 0.0
    %314 = vmatpush1.msra.mxu0 0.0
    %315 = vmatprep.subr.mxu0 0.0
    %316 = vmatpush1.msra.mxu0 0.0
    %317 = vmatprep.subr.mxu0 0.0
    %318 = vmatpush1.msra.mxu0 0.0
    %319 = vmatprep.subr.mxu0 0.0
    %320 = vmatpush1.msra.mxu0 0.0
    %321 = vmatprep.subr.mxu0 0.0
    %322 = vmatpush1.msra.mxu0 0.0
    %323 = vmatprep.subr.mxu0 0.0
    %324 = vmatpush1.msra.mxu0 0.0
    %325 = vmatprep.subr.mxu0 0.0
    %326 = vmatpush1.msra.mxu0 0.0
    %327 = vmatprep.subr.mxu0 0.0
    %328 = vmatpush1.msra.mxu0 0.0
    %329 = vmatprep.subr.mxu0 0.0
    %330 = vmatpush1.msra.mxu0 0.0
    %331 = vmatprep.subr.mxu0 0.0
    %332 = vmatpush1.msra.mxu0 0.0
    %333 = vmatprep.subr.mxu0 0.0
    %334 = vmatpush1.msra.mxu0 0.0
    %335 = vmatprep.subr.mxu0 0.0
    %336 = vmatpush1.msra.mxu0 0.0
    %337 = vmatprep.subr.mxu0 0.0
    %338 = vmatpush1.msra.mxu0 %v297
    %339 = vmatprep.subr.mxu0 0.0
    %340 = vmatpush1.msra.mxu0 %v296
    %341 = vmatprep.subr.mxu0 0.0
    %342 = vmatpush1.msra.mxu0 %v295
    %343 = vmatprep.subr.mxu0 0.0
    %344 = vmatpush1.msra.mxu0 %v294
    %345 = vmatprep.subr.mxu0 0.0
    %346 = vmatpush2.msra.mxu0 0.0
    %347 = vmatprep.subr.mxu0 0.0
    %348 = vmatpush2.msra.mxu0 0.0
    %349 = vmatprep.subr.mxu0 0.0
    %350 = vmatpush2.msra.mxu0 0.0
    %351 = vmatprep.subr.mxu0 0.0
    %352 = vmatpush2.msra.mxu0 0.0
    %353 = vmatprep.subr.mxu0 0.0
    %354 = vmatpush2.msra.mxu0 0.0
    %355 = vmatprep.subr.mxu0 0.0
    %356 = vmatpush2.msra.mxu0 0.0
    %357 = vmatprep.subr.mxu0 0.0
    %358 = vmatpush2.msra.mxu0 0.0
    %359 = vmatprep.subr.mxu0 0.0
    %360 = vmatpush2.msra.mxu0 0.0
    %361 = vmatprep.subr.mxu0 0.0
    %362 = vmatpush2.msra.mxu0 0.0
    %363 = vmatprep.subr.mxu0 0.0
    %364 = vmatpush2.msra.mxu0 0.0
    %365 = vmatprep.subr.mxu0 0.0
    %366 = vmatpush2.msra.mxu0 0.0
    %367 = vmatprep.subr.mxu0 0.0
    %368 = vmatpush2.msra.mxu0 0.0
    %369 = vmatprep.subr.mxu0 0.0
    %370 = vmatpush2.msra.mxu0 0.0
    %371 = vmatprep.subr.mxu0 0.0
    %372 = vmatpush2.msra.mxu0 0.0
    %373 = vmatprep.subr.mxu0 0.0
    %374 = vmatpush2.msra.mxu0 0.0
    %375 = vmatprep.subr.mxu0 0.0
    %376 = vmatpush2.msra.mxu0 0.0
    %377 = vmatprep.mubr.f32.mxu0 0.0
    %378 = vmatmul.mubr.f32.gmra.mxu0 %v311
    %v379 = vpop.f32.mrf.mxu0
    %v380 = vadd.f32 %v309, %v379
    %v381 = vpop.f32.mrf.mxu0
    %382 = vdwg.mxu0
    %v383 = vtanh.pop %v380
    %v384 = vstv %s299
    %v385 = vmul.f32 %v384, %v383
    %vm386 = vcmask 57344
    %387 = vst.msk [vmem:[#allocation4] sm:$0x1] %vm386, %v385
    // Predicated region
    $region34: #{tpu_custom_call.1} parent=1 // pred_check
      _
    $region35: #{tpu_custom_call.1} parent=1 // pred_check_branch
      %389 = sbr.rel (0) target = $region37
    $region36: #{tpu_custom_call.1} parent=1 // pred_region
      %s391 = ssub.s32 16, 16
      %392 = vsyncadd [#allocation5], %s391
      %s394 = sshll.u32 [#allocation4], 4
      %s395 = int_to_ptr.vmem [resolvable:$true] %s394
      %397 = dma.vmem_to_hbm [thread:$0]  %s395, 16, %s8, [#allocation5]
    $region37: #{tpu_custom_call.1} parent=1 // pred_fallthru
      _
    // Predicated region
    $region38: #{tpu_custom_call.1} parent=1 // pred_check
      _
    $region39: #{tpu_custom_call.1} parent=1 // pred_check_branch
      %399 = sbr.rel (0) target = $region41
    $region40: #{tpu_custom_call.1} parent=1 // pred_region
      %400 = dma.done [#allocation5], 16
    $region41: #{tpu_custom_call.1} parent=1 // pred_fallthru
      _
    %401 = vsyncpa [#allocation5], 1

</llo_original>
